<compile_context>
chip_gen: v5e
topology: v5e:2x2
jax: 0.10.0
libtpu: 0.0.40
codegen_flags: <defaults>
</compile_context>

<pallas_src>
import functools

import jax
import jax.numpy as jnp
from jax.experimental import pallas as pl
from jax.experimental.pallas import tpu as pltpu

BN_EPS = 1e-5
_LANE = 128
_TARGET_BLOCK_BYTES = 16 * 1024 * 1024  # target size of one streamed x tile


# ----------------------------------------------------------------------------
# VMEM budgeting
# ----------------------------------------------------------------------------
def _vmem_limit_bytes():
    """Generation-aware scoped-VMEM budget: ~70% of physical, clamped.

    v7x (64 MiB physical)  -> ~45 MiB  (leaves headroom for Mosaic scratch)
    v5e/v6e (128 MiB)      -> ~90 MiB  (well above the 16/32 MiB defaults)
    """
    phys = 128 << 20
    try:
        info = pltpu.get_tpu_info()
        phys = int(getattr(info, "vmem_capacity_bytes", phys)) or phys
    except Exception:
        pass
    return int(min(max(int(phys * 0.7), 16 << 20), 100 << 20))


def _pick_tile(dim, multiple, cap):
    """Largest divisor of `dim` that is a multiple of `multiple` and <= cap.

    Falls back to `dim` itself (a full-extent block is always legal)."""
    cap = max(multiple, min(dim, int(cap)))
    for t in range(cap, 0, -1):
        if dim % t == 0 and t % multiple == 0:
            return t
    return dim


# ----------------------------------------------------------------------------
# Kernels
# ----------------------------------------------------------------------------
def _gap_bn_kernel(x_ref, gamma_ref, beta_ref, gfeat_ref, feat_ref, *, inv_hw):
    """One (channel-block, spatial-block) grid step.

    x_ref:      (B, TC, THW)  feature tile, native NC(HW) layout, any float dtype
    gamma/beta: (1, TC)       BatchNorm1d affine params for this channel block
    gfeat_ref:  (B, TC) f32   GAP features; doubles as the spatial-sum
                              accumulator (block index constant across hi).
    feat_ref:   (B, TC) f32   BNNeck features, written at the last hi step.
    """
    hi = pl.program_id(1)

    @pl.when(hi == 0)
    def _():
        gfeat_ref[...] = jnp.zeros_like(gfeat_ref)

    # Spatial partial sum: lane-axis (XLU) reduction, f32 accumulation
    # regardless of input dtype (works on v5e where the VPU has no bf16).
    gfeat_ref[...] += jnp.sum(x_ref[...], axis=-1, dtype=jnp.float32)

    @pl.when(hi == pl.num_programs(1) - 1)
    def _():
        gf = gfeat_ref[...] * inv_hw                             # (B, TC)
        gfeat_ref[...] = gf
        # BNNeck: BatchNorm1d in training mode (biased batch statistics).
        mu = jnp.mean(gf, axis=0, keepdims=True)                 # (1, TC)
        var = jnp.mean((gf - mu) ** 2, axis=0, keepdims=True)    # (1, TC)
        scale = gamma_ref[...] * jax.lax.rsqrt(var + BN_EPS)     # gamma*inv_std
        feat_ref[...] = (gf - mu) * scale + beta_ref[...]


def _classifier_kernel(feat_ref, w_ref, cls_ref):
    """Bias-free Linear on the native PyTorch (N, C) weight layout.

    feat: (B, C), w: (TN, C) -> contract C with C (Mosaic handles the MXU-side
    transpose; no wrapper-side weight transpose / HBM round trip needed).
    """
    cls_ref[...] = jax.lax.dot_general(
        feat_ref[...], w_ref[...],
        dimension_numbers=(((1,), (1,)), ((), ())),
        preferred_element_type=jnp.float32)


# ----------------------------------------------------------------------------
# Wrappers
# ----------------------------------------------------------------------------
def _run_classifier(feat, cls_weight, *, n_tile, vmem_limit, compute_dtype=None):
    B, C = feat.shape
    N = cls_weight.shape[0]
    assert n_tile % _LANE == 0
    dt = compute_dtype if compute_dtype is not None else cls_weight.dtype
    w = cls_weight.astype(dt)
    f = feat.astype(dt)
    cost = pl.CostEstimate(flops=2 * B * C * N, transcendentals=0,
                           bytes_accessed=(B * C + N * C) * w.dtype.itemsize
                           + B * N * 4)

    if N <= n_tile:
        # Single full-extent block (legal for any N); typical small-class case.
        return pl.pallas_call(
            _classifier_kernel,
            out_shape=jax.ShapeDtypeStruct((B, N), jnp.float32),
            compiler_params=pltpu.CompilerParams(vmem_limit_bytes=vmem_limit),
            cost_estimate=cost,
        )(f, w)

    # Class-dim grid with lane-dense (multiple-of-128) blocks.
    n_pad = pl.cdiv(N, n_tile) * n_tile
    if n_pad != N:
        # TODO(synk): in production pre-pad the classifier weight once at init
        # time so this per-step row pad (and its HBM copy) disappears.
        w = jnp.pad(w, ((0, n_pad - N), (0, 0)))
    cls_pad = pl.pallas_call(
        _classifier_kernel,
        grid_spec=pltpu.PrefetchScalarGridSpec(
            num_scalar_prefetch=0,
            grid=(n_pad // n_tile,),
            in_specs=[
                pl.BlockSpec((B, C), lambda ni: (0, 0)),
                pl.BlockSpec((n_tile, C), lambda ni: (ni, 0)),
            ],
            out_specs=pl.BlockSpec((B, n_tile), lambda ni: (0, ni)),
        ),
        out_shape=jax.ShapeDtypeStruct((B, n_pad), jnp.float32),
        compiler_params=pltpu.CompilerParams(
            dimension_semantics=("parallel",),
            vmem_limit_bytes=vmem_limit),
        cost_estimate=cost,
    )(f, w)
    return cls_pad[:, :N] if n_pad != N else cls_pad


def backbone_forward(x_nchw, bn_gamma, bn_beta, cls_weight,
                     *, c_tile=None, hw_tile=None, n_tile=256,
                     classifier_dtype=None):
    """x_nchw: (B, C, H, W) feature map (output of the ResNet trunk), f32 or bf16.

    bn_gamma/bn_beta: (C,) BatchNorm1d affine params.
    cls_weight: (num_classes, C) PyTorch-layout Linear weight (no bias).
    classifier_dtype: optional compute dtype for the classifier matmul
      (e.g. jnp.bfloat16 to halve weight DMA; accumulation stays f32).
    Returns (cls_score (B, num_classes) f32, global_feat (B, C) f32).
    """
    B, C, H, W = x_nchw.shape
    HW = H * W

    # Glue (no data movement for x): native NCHW -> (B, C, HW).
    x = x_nchw.reshape(B, C, HW)
    gamma = bn_gamma.reshape(1, C).astype(jnp.float32)
    beta = bn_beta.reshape(1, C).astype(jnp.float32)

    vmem_limit = _vmem_limit_bytes()
    itemsize = x.dtype.itemsize
    # Target x-block size: large (~16 MiB) but never more than budget/6, so the
    # double-buffered input plus the in-kernel f32 upcast temp (worst case
    # ~4x the block for bf16 inputs) stays inside the declared VMEM limit.
    target = min(_TARGET_BLOCK_BYTES, vmem_limit // 6)

    if hw_tile is None:
        # Prefer full-HW spatial rows: longest contiguous (lane-axis) DMA runs
        # and usually a single reduction step.
        c_min = _LANE if (C % _LANE == 0 and C >= _LANE) else C
        if HW % _LANE != 0 or B * c_min * HW * itemsize <= target:
            hw_tile = HW
        else:
            hw_cap = max(_LANE, target // max(B * c_min * itemsize, 1))
            hw_tile = _pick_tile(HW, _LANE, hw_cap)
    if c_tile is None:
        c_cap = max(_LANE, target // max(B * hw_tile * itemsize, 1))
        c_tile = _pick_tile(C, _LANE, c_cap)
        # Keep >= 2 channel blocks so the "parallel" ci axis shards across both
        # v7x TensorCores (costs ~0.35us of extra grid overhead elsewhere).
        if C // c_tile < 2 and C % _LANE == 0 and C >= 2 * _LANE:
            half = _pick_tile(C, _LANE, max(_LANE, C // 2))
            if C % half == 0 and C // half >= 2:
                c_tile = half
    assert C % c_tile == 0 and HW % hw_tile == 0

    grid = (C // c_tile, HW // hw_tile)

    global_feat, feat = pl.pallas_call(
        functools.partial(_gap_bn_kernel, inv_hw=1.0 / HW),
        grid_spec=pltpu.PrefetchScalarGridSpec(
            num_scalar_prefetch=0,
            grid=grid,
            in_specs=[
                pl.BlockSpec((B, c_tile, hw_tile), lambda ci, hi: (0, ci, hi)),
                pl.BlockSpec((1, c_tile), lambda ci, hi: (0, ci)),
                pl.BlockSpec((1, c_tile), lambda ci, hi: (0, ci)),
            ],
            out_specs=[
                pl.BlockSpec((B, c_tile), lambda ci, hi: (0, ci)),
                pl.BlockSpec((B, c_tile), lambda ci, hi: (0, ci)),
            ],
        ),
        out_shape=(
            jax.ShapeDtypeStruct((B, C), jnp.float32),   # global_feat
            jax.ShapeDtypeStruct((B, C), jnp.float32),   # BN-neck feat
        ),
        compiler_params=pltpu.CompilerParams(
            dimension_semantics=("parallel", "arbitrary"),
            vmem_limit_bytes=vmem_limit,
        ),
    )(x, gamma, beta)

    cls_score = _run_classifier(feat, cls_weight, n_tile=n_tile,
                                vmem_limit=vmem_limit,
                                compute_dtype=classifier_dtype)
    return cls_score, global_feat


# ----------------------------------------------------------------------------
# Reference & test
# ----------------------------------------------------------------------------
def _reference(x_nchw, bn_gamma, bn_beta, cls_weight):
    """Pure-JAX reference mirroring the PyTorch forward (training mode)."""
    gf = jnp.mean(x_nchw.astype(jnp.float32), axis=(2, 3))       # (B, C)
    mu = jnp.mean(gf, axis=0, keepdims=True)
    var = jnp.mean((gf - mu) ** 2, axis=0, keepdims=True)        # biased var
    feat = (gf - mu) / jnp.sqrt(var + BN_EPS) * bn_gamma + bn_beta
    cls = feat @ cls_weight.T.astype(jnp.float32)
    return cls, gf


if __name__ == "__main__":
    # Small, TPU-friendly shapes consistent with the module's head
    # (in_planes=2048 in the real model; scaled down here).
    B, C, H, W = 4, 256, 16, 16
    num_classes = 16

    key = jax.random.PRNGKey(0)
    k_x, k_w, k_w2 = jax.random.split(key, 3)

    # Deterministic parameter init matching Backbone.__init__:
    #   bottleneck (BatchNorm1d): weights_init_kaiming -> gamma=1, beta=0
    #   classifier (Linear, bias=False): weights_init_classifier -> N(0, 0.001)
    bn_gamma = jnp.ones((C,), jnp.float32)
    bn_beta = jnp.zeros((C,), jnp.float32)
    cls_weight = 0.001 * jax.random.normal(k_w, (num_classes, C), jnp.float32)

    # Synthetic backbone feature map (stands in for self.base(x))
    x_f32 = jax.random.normal(k_x, (B, C, H, W), jnp.float32)

    # --- f32 path, auto-picked tiles (single-block classifier) ---
    cls_f32, gf_f32 = backbone_forward(x_f32, bn_gamma, bn_beta, cls_weight)
    jax.block_until_ready((cls_f32, gf_f32))
    ref_cls, ref_gf = _reference(x_f32, bn_gamma, bn_beta, cls_weight)
    assert cls_f32.shape == (B, num_classes)
    assert gf_f32.shape == (B, C)
    assert jnp.allclose(gf_f32, ref_gf, atol=1e-5, rtol=1e-5)
    assert jnp.allclose(cls_f32, ref_cls, atol=1e-4, rtol=1e-4)

    # --- bf16 path (halves HBM traffic of the dominant GAP read), forced
    # multi-tile grid (2 channel blocks x 2 spatial blocks) to exercise the
    # accumulator init / finalize logic ---
    x_bf16 = x_f32.astype(jnp.bfloat16)
    cls_b, gf_b = backbone_forward(x_bf16, bn_gamma, bn_beta, cls_weight,
                                   c_tile=128, hw_tile=128)
    jax.block_until_ready((cls_b, gf_b))
    ref_cls_b, ref_gf_b = _reference(x_bf16, bn_gamma, bn_beta, cls_weight)
    assert jnp.allclose(gf_b, ref_gf_b, atol=1e-4, rtol=1e-4)
    assert jnp.allclose(cls_b, ref_cls_b, atol=1e-4, rtol=1e-3)

    # --- larger class count: exercises the gridded, lane-dense classifier
    # path (class dim padded from 300 -> 384, grid of 3 blocks of 128) ---
    num_classes_big = 300
    cls_weight_big = 0.001 * jax.random.normal(k_w2, (num_classes_big, C),
                                               jnp.float32)
    cls_big, gf_big = backbone_forward(x_f32, bn_gamma, bn_beta,
                                       cls_weight_big, n_tile=128)
    jax.block_until_ready((cls_big, gf_big))
    ref_cls_big, _ = _reference(x_f32, bn_gamma, bn_beta, cls_weight_big)
    assert cls_big.shape == (B, num_classes_big)
    assert jnp.allclose(cls_big, ref_cls_big, atol=1e-4, rtol=1e-4)

    print("KERNEL_OK")
</pallas_src>

<mosaic_0001>
module attributes {stable_mosaic.version = 11 : i64} {
  func.func @_gap_bn_kernel(%arg0: i32, %arg1: i32, %arg2: memref<4x128x256xf32, #tpu.memory_space<vmem>>, %arg3: memref<1x128xf32, #tpu.memory_space<vmem>>, %arg4: memref<1x128xf32, #tpu.memory_space<vmem>>, %arg5: memref<4x128xf32, #tpu.memory_space<vmem>>, %arg6: memref<4x128xf32, #tpu.memory_space<vmem>>) attributes {dimension_semantics = [#tpu.dimension_semantics<parallel>, #tpu.dimension_semantics<arbitrary>], iteration_bounds = array<i64: 2, 1>, scalar_prefetch = 0 : i64, scratch_operands = 0 : i64, tpu.core_type = #tpu.core_type<tc>, window_params = [{transform_indices = @transform_0, window_bounds = array<i64: 4, 128, 256>}, {transform_indices = @transform_1, window_bounds = array<i64: 1, 128>}, {transform_indices = @transform_2, window_bounds = array<i64: 1, 128>}, {transform_indices = @transform_3, window_bounds = array<i64: 4, 128>}, {transform_indices = @transform_4, window_bounds = array<i64: 4, 128>}]} {
    %c0_i32 = arith.constant 0 : i32
    %0 = arith.cmpi eq, %arg1, %c0_i32 : i32
    %1 = arith.extui %0 : i1 to i32
    %c0_i32_0 = arith.constant 0 : i32
    %2 = arith.cmpi ne, %1, %c0_i32_0 : i32
    scf.if %2 {
      %cst_9 = arith.constant 0.000000e+00 : f32
      %11 = vector.broadcast %cst_9 : f32 to vector<4x128xf32>
      %c0_10 = arith.constant 0 : index
      %c0_11 = arith.constant 0 : index
      %12 = vector.load %arg5[%c0_10, %c0_11] : memref<4x128xf32, #tpu.memory_space<vmem>>, vector<4x128xf32>
      tpu.vector_store %arg5[%c0_10, %c0_11], %11 {strides = array<i32>} : memref<4x128xf32, #tpu.memory_space<vmem>>, vector<4x128xf32>,
    } else {
    }
    %c0 = arith.constant 0 : index
    %c0_1 = arith.constant 0 : index
    %3 = vector.load %arg5[%c0, %c0_1] : memref<4x128xf32, #tpu.memory_space<vmem>>, vector<4x128xf32>
    %c0_2 = arith.constant 0 : index
    %c0_3 = arith.constant 0 : index
    %c0_4 = arith.constant 0 : index
    %4 = vector.load %arg2[%c0_2, %c0_3, %c0_4] : memref<4x128x256xf32, #tpu.memory_space<vmem>>, vector<4x128x256xf32>
    %cst = arith.constant dense<0.000000e+00> : vector<4x128xf32>
    %5 = vector.multi_reduction <add>, %4, %cst [2] : vector<4x128x256xf32> to vector<4x128xf32>
    %6 = arith.addf %3, %5 : vector<4x128xf32>
    %c0_5 = arith.constant 0 : index
    %c0_6 = arith.constant 0 : index
    %7 = vector.load %arg5[%c0_5, %c0_6] : memref<4x128xf32, #tpu.memory_space<vmem>>, vector<4x128xf32>
    tpu.vector_store %arg5[%c0_5, %c0_6], %6 {strides = array<i32>} : memref<4x128xf32, #tpu.memory_space<vmem>>, vector<4x128xf32>,
    %c0_i32_7 = arith.constant 0 : i32
    %8 = arith.cmpi eq, %arg1, %c0_i32_7 : i32
    %9 = arith.extui %8 : i1 to i32
    %c0_i32_8 = arith.constant 0 : i32
    %10 = arith.cmpi ne, %9, %c0_i32_8 : i32
    scf.if %10 {
      %c0_9 = arith.constant 0 : index
      %c0_10 = arith.constant 0 : index
      %11 = vector.load %arg5[%c0_9, %c0_10] : memref<4x128xf32, #tpu.memory_space<vmem>>, vector<4x128xf32>
      %cst_11 = arith.constant 3.906250e-03 : f32
      %12 = vector.broadcast %cst_11 : f32 to vector<4x128xf32>
      %13 = arith.mulf %11, %12 : vector<4x128xf32>
      %c0_12 = arith.constant 0 : index
      %c0_13 = arith.constant 0 : index
      %14 = vector.load %arg5[%c0_12, %c0_13] : memref<4x128xf32, #tpu.memory_space<vmem>>, vector<4x128xf32>
      tpu.vector_store %arg5[%c0_12, %c0_13], %13 {strides = array<i32>} : memref<4x128xf32, #tpu.memory_space<vmem>>, vector<4x128xf32>,
      %cst_14 = arith.constant dense<0.000000e+00> : vector<128xf32>
      %15 = vector.multi_reduction <add>, %13, %cst_14 [0] : vector<4x128xf32> to vector<128xf32>
      %16 = vector.shape_cast %15 : vector<128xf32> to vector<1x128xf32>
      %cst_15 = arith.constant 4.000000e+00 : f32
      %17 = vector.broadcast %cst_15 : f32 to vector<1x128xf32>
      %18 = arith.divf %16, %17 : vector<1x128xf32>
      %19 = vector.broadcast %18 : vector<1x128xf32> to vector<4x128xf32>
      %20 = arith.subf %13, %19 : vector<4x128xf32>
      %21 = arith.mulf %20, %20 : vector<4x128xf32>
      %cst_16 = arith.constant dense<0.000000e+00> : vector<128xf32>
      %22 = vector.multi_reduction <add>, %21, %cst_16 [0] : vector<4x128xf32> to vector<128xf32>
      %23 = vector.shape_cast %22 : vector<128xf32> to vector<1x128xf32>
      %cst_17 = arith.constant 4.000000e+00 : f32
      %24 = vector.broadcast %cst_17 : f32 to vector<1x128xf32>
      %25 = arith.divf %23, %24 : vector<1x128xf32>
      %c0_18 = arith.constant 0 : index
      %c0_19 = arith.constant 0 : index
      %26 = vector.load %arg3[%c0_18, %c0_19] : memref<1x128xf32, #tpu.memory_space<vmem>>, vector<1x128xf32>
      %cst_20 = arith.constant 9.99999974E-6 : f32
      %27 = vector.broadcast %cst_20 : f32 to vector<1x128xf32>
      %28 = arith.addf %25, %27 : vector<1x128xf32>
      %29 = math.rsqrt %28 : vector<1x128xf32>
      %30 = arith.mulf %26, %29 : vector<1x128xf32>
      %31 = vector.broadcast %18 : vector<1x128xf32> to vector<4x128xf32>
      %32 = arith.subf %13, %31 : vector<4x128xf32>
      %33 = vector.broadcast %30 : vector<1x128xf32> to vector<4x128xf32>
      %34 = arith.mulf %32, %33 : vector<4x128xf32>
      %c0_21 = arith.constant 0 : index
      %c0_22 = arith.constant 0 : index
      %35 = vector.load %arg4[%c0_21, %c0_22] : memref<1x128xf32, #tpu.memory_space<vmem>>, vector<1x128xf32>
      %36 = vector.broadcast %35 : vector<1x128xf32> to vector<4x128xf32>
      %37 = arith.addf %34, %36 : vector<4x128xf32>
      %c0_23 = arith.constant 0 : index
      %c0_24 = arith.constant 0 : index
      %38 = vector.load %arg6[%c0_23, %c0_24] : memref<4x128xf32, #tpu.memory_space<vmem>>, vector<4x128xf32>
      tpu.vector_store %arg6[%c0_23, %c0_24], %37 {strides = array<i32>} : memref<4x128xf32, #tpu.memory_space<vmem>>, vector<4x128xf32>,
    } else {
    }
    return
  }
  func.func @transform_0(%arg0: i32, %arg1: i32) -> (i32, i32, i32) {
    %c0_i32 = arith.constant 0 : i32
    %c0_i32_0 = arith.constant 0 : i32
    return %c0_i32, %arg0, %arg1 : i32, i32, i32
  }
  func.func @transform_1(%arg0: i32, %arg1: i32) -> (i32, i32) {
    %c0_i32 = arith.constant 0 : i32
    %c0_i32_0 = arith.constant 0 : i32
    return %c0_i32, %arg0 : i32, i32
  }
  func.func @transform_2(%arg0: i32, %arg1: i32) -> (i32, i32) {
    %c0_i32 = arith.constant 0 : i32
    %c0_i32_0 = arith.constant 0 : i32
    return %c0_i32, %arg0 : i32, i32
  }
  func.func @transform_3(%arg0: i32, %arg1: i32) -> (i32, i32) {
    %c0_i32 = arith.constant 0 : i32
    %c0_i32_0 = arith.constant 0 : i32
    return %c0_i32, %arg0 : i32, i32
  }
  func.func @transform_4(%arg0: i32, %arg1: i32) -> (i32, i32) {
    %c0_i32 = arith.constant 0 : i32
    %c0_i32_0 = arith.constant 0 : i32
    return %c0_i32, %arg0 : i32, i32
  }
}

</mosaic_0001>

<llo_original>
// kernel: tpu_custom_call.1
$region0: #{tpu_custom_call.1}
  #allocation0 [shape = 'u32[]', space=smem, size = 0x4, offset = 0x4, fixed_abs, tag = 'smem constant byte address 0x4 - core index']
  #allocation1 [shape = 'u32[72,128]{1,0:T(1,128)}', space=vmem, size = 0x9000, scoped, tag = 'internal scratch']
  #allocation11 [shape = 's32[]', space=sflag, size = 0x4, offset = 0, fixed_abs, tag = 'sflag constant byte address 0x0 - dummy sync flag']
  %s0 = inlined_call_operand.hbm [shape: f32[4,256,256], index: 0, kind: input, shape index: {}]
  %s1 = inlined_call_operand.hbm [shape: f32[1,256], index: 1, kind: input, shape index: {}]
  %s2 = inlined_call_operand.hbm [shape: f32[1,256], index: 2, kind: input, shape index: {}]
  %s3 = inlined_call_operand.hbm [shape: f32[4,256], index: 3, kind: output, shape index: {0}]
  %s4 = inlined_call_operand.hbm [shape: f32[4,256], index: 4, kind: output, shape index: {1}]
  %5 = xla_tuple %s3, %s4
  %s6 = sld [smem:[#allocation0]]
  $region73: #{tpu_custom_call.1} parent=0
    _
  %s8 = ssub.s32 1, %s6
  %s9 = scalar_select 0, %s8, %s6
  $region1: #{tpu_custom_call.1} parent=0
    #allocation2 [shape = 'u8[1048576]{0}', space=vmem, size = 0x100000, scoped, tag = 'input window, operand 0']
    #allocation3 [shape = 's32[2]{0}', space=sflag, size = 0x8, scoped, tag = 'scoped memory for tpu_custom_call.1']
    #allocation4 [shape = 's32[2]{0}', space=sflag, size = 0x8, scoped, tag = 'scoped memory for tpu_custom_call.1']
    #allocation5 [shape = 'u8[1024]{0}', space=vmem, size = 0x400, scoped, tag = 'input window, operand 1']
    #allocation6 [shape = 's32[2]{0}', space=sflag, size = 0x8, scoped, tag = 'scoped memory for tpu_custom_call.1']
    #allocation7 [shape = 'u8[1024]{0}', space=vmem, size = 0x400, scoped, tag = 'input window, operand 2']
    #allocation8 [shape = 'u8[4096]{0}', space=vmem, size = 0x1000, scoped, tag = 'output window, operand 0']
    #allocation9 [shape = 'u8[4096]{0}', space=vmem, size = 0x1000, scoped, tag = 'output window, operand 1']
    #allocation10 [shape = 's32[2]{0}', space=sflag, size = 0x8, scoped, tag = 'scoped memory for tpu_custom_call.1']
    %10 = vsyncpa [#allocation3], 0
    %s11 = scalar_lea.sflag [#allocation3], 1
    %12 = vsyncpa %s11, 0
    %13 = vsyncpa [#allocation6], 0
    %s14 = scalar_lea.sflag [#allocation6], 1
    %15 = vsyncpa %s14, 0
    %16 = vsyncpa [#allocation4], 0
    %s17 = scalar_lea.sflag [#allocation4], 1
    %18 = vsyncpa %s17, 0
    %19 = vsyncpa [#allocation10], 0
    %s20 = scalar_lea.sflag [#allocation10], 1
    %21 = vsyncpa %s20, 0
    loop: start=0, step=1, limit=4
    $region2: #{tpu_custom_call.1} parent=1 // loop_pre_header
      _
    $region3: #{tpu_custom_call.1} parent=1 // loop_header
      %s23 = sphi 0, %s27
      %p24 = scmp.ge.s32.totalorder %s23, 4
      %s30 = sphi 0, %s42
      %s31 = sphi 0, %s38
      %s32 = sphi 0, %s30
      %s33 = sphi 0, %s31
      %s34 = sphi 0, %s32
      %s35 = sphi 0, %s33
      %s47 = sphi 0, %s49
      %s50 = sphi 0, %s47
      %s51 = sphi 0, %s50
      %s67 = sphi 0, %s51
      %s73 = sphi 0, %s75
      %s76 = sphi 0, %s73
      %s77 = sphi 0, %s76
      %s93 = sphi 0, %s77
      %s99 = sphi 0, %s101
      %s102 = sphi 0, %s99
      %s103 = sphi 0, %s102
      %s119 = sphi 0, %s103
      %s125 = sphi 0, %s127
      %s128 = sphi 0, %s125
      %s129 = sphi 0, %s128
      %s145 = sphi 0, %s129
      %s151 = sphi 0, %s153
      %s154 = sphi 0, %s151
      %s155 = sphi 0, %s154
      %s171 = sphi 0, %s155
    $region4: #{tpu_custom_call.1} parent=1 // loop_header_branch
      %26 = sbr.rel (%p24) target = $region8
    $region5: #{tpu_custom_call.1} parent=1 // loop_body
      %s28 = ssub.s32 %s23, 1
      %s29 = ssub.s32 %s23, 2
      %s36 = sadd.s32 1, %s31
      %p37 = scmp.ge.s32.totalorder %s36, 1
      %s38 = scalar_select %p37, 0, %s36
      %s39 = sadd.s32 1, %s30
      %s40 = scalar_select %p37, %s39, %s30
      %p41 = scmp.ge.s32.totalorder %s40, 2
      %s42 = scalar_select %p41, 0, %s40
      %s43 = ssub.s32 %s30, %s42
      %s44 = ssub.s32 %s31, %s38
      %s45 = sor.u32 %s43, %s44
      %p46 = scmp.eq.s32.totalorder %s45, 0
      %s48 = sadd.s32 %s47, 1
      %s49 = scalar_select %p46, %s47, %s48
      %p52 = pneg %p46
      %p53 = scmp.eq.s32.totalorder %s23, 1
      %p54 = por %p52, %p53
      %p55 = scmp.ne.s32.totalorder %s47, %s50
      %p56 = scmp.eq.s32.totalorder %s23, 0
      %p57 = por %p55, %p56
      %p58 = scmp.ne.s32.totalorder %s47, %s50
      %p59 = scmp.eq.s32.totalorder %s28, 1
      %p60 = por %p58, %p59
      %p61 = scmp.ne.s32.totalorder %s50, %s51
      %p62 = scmp.eq.s32.totalorder %s28, 0
      %p63 = por %p61, %p62
      %p64 = scmp.ne.s32.totalorder %s50, %s51
      %p65 = scmp.eq.s32.totalorder %s29, 1
      %p66 = por %p64, %p65
      %p68 = scmp.ne.s32.totalorder %s51, %s67
      %p69 = scmp.eq.s32.totalorder %s29, 0
      %p70 = por %p68, %p69
      %s71 = ssub.s32 %s30, %s42
      %p72 = scmp.eq.s32.totalorder %s71, 0
      %s74 = sadd.s32 %s73, 1
      %s75 = scalar_select %p72, %s73, %s74
      %p78 = pneg %p72
      %p79 = scmp.eq.s32.totalorder %s23, 1
      %p80 = por %p78, %p79
      %p81 = scmp.ne.s32.totalorder %s73, %s76
      %p82 = scmp.eq.s32.totalorder %s23, 0
      %p83 = por %p81, %p82
      %p84 = scmp.ne.s32.totalorder %s73, %s76
      %p85 = scmp.eq.s32.totalorder %s28, 1
      %p86 = por %p84, %p85
      %p87 = scmp.ne.s32.totalorder %s76, %s77
      %p88 = scmp.eq.s32.totalorder %s28, 0
      %p89 = por %p87, %p88
      %p90 = scmp.ne.s32.totalorder %s76, %s77
      %p91 = scmp.eq.s32.totalorder %s29, 1
      %p92 = por %p90, %p91
      %p94 = scmp.ne.s32.totalorder %s77, %s93
      %p95 = scmp.eq.s32.totalorder %s29, 0
      %p96 = por %p94, %p95
      %s97 = ssub.s32 %s30, %s42
      %p98 = scmp.eq.s32.totalorder %s97, 0
      %s100 = sadd.s32 %s99, 1
      %s101 = scalar_select %p98, %s99, %s100
      %p104 = pneg %p98
      %p105 = scmp.eq.s32.totalorder %s23, 1
      %p106 = por %p104, %p105
      %p107 = scmp.ne.s32.totalorder %s99, %s102
      %p108 = scmp.eq.s32.totalorder %s23, 0
      %p109 = por %p107, %p108
      %p110 = scmp.ne.s32.totalorder %s99, %s102
      %p111 = scmp.eq.s32.totalorder %s28, 1
      %p112 = por %p110, %p111
      %p113 = scmp.ne.s32.totalorder %s102, %s103
      %p114 = scmp.eq.s32.totalorder %s28, 0
      %p115 = por %p113, %p114
      %p116 = scmp.ne.s32.totalorder %s102, %s103
      %p117 = scmp.eq.s32.totalorder %s29, 1
      %p118 = por %p116, %p117
      %p120 = scmp.ne.s32.totalorder %s103, %s119
      %p121 = scmp.eq.s32.totalorder %s29, 0
      %p122 = por %p120, %p121
      %s123 = ssub.s32 %s30, %s42
      %p124 = scmp.eq.s32.totalorder %s123, 0
      %s126 = sadd.s32 %s125, 1
      %s127 = scalar_select %p124, %s125, %s126
      %p130 = pneg %p124
      %p131 = scmp.eq.s32.totalorder %s23, 1
      %p132 = por %p130, %p131
      %p133 = scmp.ne.s32.totalorder %s125, %s128
      %p134 = scmp.eq.s32.totalorder %s23, 0
      %p135 = por %p133, %p134
      %p136 = scmp.ne.s32.totalorder %s125, %s128
      %p137 = scmp.eq.s32.totalorder %s28, 1
      %p138 = por %p136, %p137
      %p139 = scmp.ne.s32.totalorder %s128, %s129
      %p140 = scmp.eq.s32.totalorder %s28, 0
      %p141 = por %p139, %p140
      %p142 = scmp.ne.s32.totalorder %s128, %s129
      %p143 = scmp.eq.s32.totalorder %s29, 1
      %p144 = por %p142, %p143
      %p146 = scmp.ne.s32.totalorder %s129, %s145
      %p147 = scmp.eq.s32.totalorder %s29, 0
      %p148 = por %p146, %p147
      %s149 = ssub.s32 %s30, %s42
      %p150 = scmp.eq.s32.totalorder %s149, 0
      %s152 = sadd.s32 %s151, 1
      %s153 = scalar_select %p150, %s151, %s152
      %p156 = pneg %p150
      %p157 = scmp.eq.s32.totalorder %s23, 1
      %p158 = por %p156, %p157
      %p159 = scmp.ne.s32.totalorder %s151, %s154
      %p160 = scmp.eq.s32.totalorder %s23, 0
      %p161 = por %p159, %p160
      %p162 = scmp.ne.s32.totalorder %s151, %s154
      %p163 = scmp.eq.s32.totalorder %s28, 1
      %p164 = por %p162, %p163
      %p165 = scmp.ne.s32.totalorder %s154, %s155
      %p166 = scmp.eq.s32.totalorder %s28, 0
      %p167 = por %p165, %p166
      %p168 = scmp.ne.s32.totalorder %s154, %s155
      %p169 = scmp.eq.s32.totalorder %s29, 1
      %p170 = por %p168, %p169
      %p172 = scmp.ne.s32.totalorder %s155, %s171
      %p173 = scmp.eq.s32.totalorder %s29, 0
      %p174 = por %p172, %p173
      %p175 = scmp.le.s32.totalorder 1, %s23
      %p176 = scmp.lt.s32.totalorder %s23, 3
      %p177 = pnand %p175, %p176
      %p178 = pneg %p177
      // Predicated region
      $region9: #{tpu_custom_call.1} parent=5 // pred_check
        _
      $region10: #{tpu_custom_call.1} parent=5 // pred_check_branch
        %180 = sbr.rel (%p177) target = $region12
      $region11: #{tpu_custom_call.1} parent=5 // pred_region
        %s181 = ssub.s32 %s23, 1
      $region12: #{tpu_custom_call.1} parent=5 // pred_fallthru
        _
      %p182 = scmp.lt.s32.totalorder %s23, 2
      // Predicated region
      $region13: #{tpu_custom_call.1} parent=5 // pred_check
        %p183 = pneg %p182
      $region14: #{tpu_custom_call.1} parent=5 // pred_check_branch
        %185 = sbr.rel (%p183) target = $region16
      $region15: #{tpu_custom_call.1} parent=5 // pred_region
        // Predicated region
        $region17: #{tpu_custom_call.1} parent=15 // pred_check
          %p186 = pneg %p57
        $region18: #{tpu_custom_call.1} parent=15 // pred_check_branch
          %188 = sbr.rel (%p186) target = $region20
        $region19: #{tpu_custom_call.1} parent=15 // pred_region
          #allocation12 [shape = 'u32[6]{0}', space=smem, size = 0x18, scoped, tag = 'DMA stride descriptor']
          %s189 = sand.u32 %s47, 1
          %s190 = scalar_lea.sflag [#allocation3], %s189
          %s191 = sand.u32 %s47, 1
          %s192 = smul.addr %s191, 1024
          %s193 = scalar_lea.vmem [#allocation2], %s192
          %s194 = smul.u32 16, %s30
          %s195 = smul.u32 2, %s31
          %197 = vsyncadd %s190, 0
          %s198 = smul.addr %s194, 2
          %s199 = sadd.s32 %s195, %s198
          %s200 = smul.addr %s199, 8
          %s201 = scalar_lea.hbm %s0, %s200
          %s203 = sshll.u32 1, 14
          %s204 = sxor.u32 4294967295, %s203
          %s206 = sld [smem:[#allocation0]]
          %s207 = sadd.s32 2, %s206
          %s209 = sshll.u32 7, 26
          %s210 = sxor.u32 4294967295, %s209
          %s211 = sand.u32 0, %s210
          %s212 = sshll.u32 %s207, 26
          %s213 = sor.u32 %s211, %s212
          %s214 = sshll.u32 %s201, 4
          %s215 = int_to_ptr.hbm [resolvable:$true] %s214
          %s216 = sshll.u32 %s193, 4
          %s217 = int_to_ptr.vmem [resolvable:$true] %s216
          %223 = sst [smem:[#allocation12]] 8192
          %s224 = scalar_lea.smem [#allocation12], 1
          %225 = sst [smem:[%s224]] 4096
          %s226 = scalar_lea.smem [#allocation12], 2
          %227 = sst [smem:[%s226]] 16
          %s228 = scalar_lea.smem [#allocation12], 3
          %229 = sst [smem:[%s228]] 256
          %s230 = scalar_lea.smem [#allocation12], 4
          %231 = sst [smem:[%s230]] 256
          %s232 = scalar_lea.smem [#allocation12], 5
          %233 = sst [smem:[%s232]] 16
          %235 = dma.general %s215, 16384, %s217, %s190, [#allocation11], [#allocation12], %s213, 0
        $region20: #{tpu_custom_call.1} parent=15 // pred_fallthru
          _
        // Predicated region
        $region21: #{tpu_custom_call.1} parent=15 // pred_check
          %p236 = pneg %p83
        $region22: #{tpu_custom_call.1} parent=15 // pred_check_branch
          %238 = sbr.rel (%p236) target = $region24
        $region23: #{tpu_custom_call.1} parent=15 // pred_region
          %s239 = sand.u32 %s23, 1
          %s240 = scalar_lea.sflag [#allocation6], %s239
          %s241 = sand.u32 %s73, 1
          %s242 = scalar_lea.vmem [#allocation5], %s241
          %244 = vsyncadd %s240, 0
          %s245 = scalar_lea.hbm %s1, %s30
          %s247 = sshll.u32 %s245, 4
          %s248 = int_to_ptr.hbm [resolvable:$true] %s247
          %s249 = sshll.u32 %s242, 4
          %s250 = int_to_ptr.vmem [resolvable:$true] %s249
          %252 = dma.hbm_to_vmem [thread:$0]  %s248, 16, %s250, %s240
        $region24: #{tpu_custom_call.1} parent=15 // pred_fallthru
          _
        // Predicated region
        $region25: #{tpu_custom_call.1} parent=15 // pred_check
          %p253 = pneg %p109
        $region26: #{tpu_custom_call.1} parent=15 // pred_check_branch
          %255 = sbr.rel (%p253) target = $region28
        $region27: #{tpu_custom_call.1} parent=15 // pred_region
          %s256 = sand.u32 %s23, 1
          %s257 = scalar_lea.sflag [#allocation6], %s256
          %s258 = sand.u32 %s99, 1
          %s259 = scalar_lea.vmem [#allocation7], %s258
          %261 = vsyncadd %s257, 0
          %s262 = scalar_lea.hbm %s2, %s30
          %s264 = sshll.u32 %s262, 4
          %s265 = int_to_ptr.hbm [resolvable:$true] %s264
          %s266 = sshll.u32 %s259, 4
          %s267 = int_to_ptr.vmem [resolvable:$true] %s266
          %269 = dma.hbm_to_vmem [thread:$0]  %s265, 16, %s267, %s257
        $region28: #{tpu_custom_call.1} parent=15 // pred_fallthru
          _
      $region16: #{tpu_custom_call.1} parent=5 // pred_fallthru
        _
      %p270 = scmp.le.s32.totalorder 1, %s23
      %p271 = scmp.lt.s32.totalorder %s23, 3
      %p272 = pnand %p270, %p271
      %p273 = pneg %p272
      // Predicated region
      $region29: #{tpu_custom_call.1} parent=5 // pred_check
        _
      $region30: #{tpu_custom_call.1} parent=5 // pred_check_branch
        %275 = sbr.rel (%p272) target = $region32
      $region31: #{tpu_custom_call.1} parent=5 // pred_region
        %s276 = ssub.s32 %s23, 1
        %s277 = sand.u32 %s50, 1
        %s278 = scalar_lea.sflag [#allocation3], %s277
        %s279 = sand.u32 %s50, 1
        %s280 = smul.addr %s279, 1024
        %s281 = scalar_lea.vmem [#allocation2], %s280
        // Predicated region
        $region33: #{tpu_custom_call.1} parent=31 // pred_check
          %p282 = pneg %p63
        $region34: #{tpu_custom_call.1} parent=31 // pred_check_branch
          %284 = sbr.rel (%p282) target = $region36
        $region35: #{tpu_custom_call.1} parent=31 // pred_region
          %286 = dma.done %s278, 16384
        $region36: #{tpu_custom_call.1} parent=31 // pred_fallthru
          _
        %s287 = sand.u32 %s28, 1
        %s288 = scalar_lea.sflag [#allocation6], %s287
        %s289 = sand.u32 %s76, 1
        %s290 = scalar_lea.vmem [#allocation5], %s289
        // Predicated region
        $region37: #{tpu_custom_call.1} parent=31 // pred_check
          %p291 = pneg %p89
        $region38: #{tpu_custom_call.1} parent=31 // pred_check_branch
          %293 = sbr.rel (%p291) target = $region40
        $region39: #{tpu_custom_call.1} parent=31 // pred_region
          %295 = dma.done %s288, 16
        $region40: #{tpu_custom_call.1} parent=31 // pred_fallthru
          _
        %s296 = sand.u32 %s28, 1
        %s297 = scalar_lea.sflag [#allocation6], %s296
        %s298 = sand.u32 %s102, 1
        %s299 = scalar_lea.vmem [#allocation7], %s298
        // Predicated region
        $region41: #{tpu_custom_call.1} parent=31 // pred_check
          %p300 = pneg %p115
        $region42: #{tpu_custom_call.1} parent=31 // pred_check_branch
          %302 = sbr.rel (%p300) target = $region44
        $region43: #{tpu_custom_call.1} parent=31 // pred_region
          %304 = dma.done %s297, 16
        $region44: #{tpu_custom_call.1} parent=31 // pred_fallthru
          _
        %s305 = sand.u32 %s50, 1
        %s306 = scalar_lea.sflag [#allocation3], %s305
        %s307 = sand.u32 %s50, 1
        %s308 = smul.addr %s307, 1024
        %s309 = scalar_lea.vmem [#allocation2], %s308
        %p310 = pneg %p63
        %p311 = pneg %p60
        %s312 = sand.u32 %s28, 1
        %s313 = scalar_lea.sflag [#allocation6], %s312
        %s314 = sand.u32 %s76, 1
        %s315 = scalar_lea.vmem [#allocation5], %s314
        %p316 = pneg %p89
        %p317 = pneg %p86
        %s318 = sand.u32 %s28, 1
        %s319 = scalar_lea.sflag [#allocation6], %s318
        %s320 = sand.u32 %s102, 1
        %s321 = scalar_lea.vmem [#allocation7], %s320
        %p322 = pneg %p115
        %p323 = pneg %p112
        %p324 = pneg %p141
        %p325 = pneg %p138
        %s326 = sand.u32 %s128, 1
        %s327 = scalar_lea.sflag [#allocation4], %s326
        %s328 = sand.u32 %s128, 1
        %s329 = smul.addr %s328, 4
        %s330 = scalar_lea.vmem [#allocation8], %s329
        %p331 = pneg %p167
        %p332 = pneg %p164
        %s333 = sand.u32 %s154, 1
        %s334 = scalar_lea.sflag [#allocation10], %s333
        %s335 = sand.u32 %s154, 1
        %s336 = smul.addr %s335, 4
        %s337 = scalar_lea.vmem [#allocation9], %s336
        %s338 = smul.u32 16, %s32
        %s339 = smul.u32 2, %s33
        %p340 = scmp.eq.s32.totalorder %s33, 0
        // Predicated region
        $region45: #{tpu_custom_call.1} parent=31 // pred_check
          %p341 = pneg %p340
        $region46: #{tpu_custom_call.1} parent=31 // pred_check_branch
          %343 = sbr.rel (%p341) target = $region48
        $region47: #{tpu_custom_call.1} parent=31 // pred_region
          %344 = vst [vmem:[%s330] sm:$0xf] 0.0
        $region48: #{tpu_custom_call.1} parent=31 // pred_fallthru
          _
        %v345 = vld [vmem:[%s330] sm:$0xf]
        %v346 = vld [vmem:[%s281] sm:$0xff]
        %v347 = vld [vmem:[%s281 + $0x8] sm:$0xff]
        %v348 = vld [vmem:[%s281 + $0x10] sm:$0xff]
        %v349 = vld [vmem:[%s281 + $0x18] sm:$0xff]
        %v350 = vld [vmem:[%s281 + $0x20] sm:$0xff]
        %v351 = vld [vmem:[%s281 + $0x28] sm:$0xff]
        %v352 = vld [vmem:[%s281 + $0x30] sm:$0xff]
        %v353 = vld [vmem:[%s281 + $0x38] sm:$0xff]
        %v354 = vld [vmem:[%s281 + $0x40] sm:$0xff]
        %v355 = vld [vmem:[%s281 + $0x48] sm:$0xff]
        %v356 = vld [vmem:[%s281 + $0x50] sm:$0xff]
        %v357 = vld [vmem:[%s281 + $0x58] sm:$0xff]
        %v358 = vld [vmem:[%s281 + $0x60] sm:$0xff]
        %v359 = vld [vmem:[%s281 + $0x68] sm:$0xff]
        %v360 = vld [vmem:[%s281 + $0x70] sm:$0xff]
        %v361 = vld [vmem:[%s281 + $0x78] sm:$0xff]
        %v362 = vld [vmem:[%s281 + $0x80] sm:$0xff]
        %v363 = vld [vmem:[%s281 + $0x88] sm:$0xff]
        %v364 = vld [vmem:[%s281 + $0x90] sm:$0xff]
        %v365 = vld [vmem:[%s281 + $0x98] sm:$0xff]
        %v366 = vld [vmem:[%s281 + $0xa0] sm:$0xff]
        %v367 = vld [vmem:[%s281 + $0xa8] sm:$0xff]
        %v368 = vld [vmem:[%s281 + $0xb0] sm:$0xff]
        %v369 = vld [vmem:[%s281 + $0xb8] sm:$0xff]
        %v370 = vld [vmem:[%s281 + $0xc0] sm:$0xff]
        %v371 = vld [vmem:[%s281 + $0xc8] sm:$0xff]
        %v372 = vld [vmem:[%s281 + $0xd0] sm:$0xff]
        %v373 = vld [vmem:[%s281 + $0xd8] sm:$0xff]
        %v374 = vld [vmem:[%s281 + $0xe0] sm:$0xff]
        %v375 = vld [vmem:[%s281 + $0xe8] sm:$0xff]
        %v376 = vld [vmem:[%s281 + $0xf0] sm:$0xff]
        %v377 = vld [vmem:[%s281 + $0xf8] sm:$0xff]
        %v378 = vld [vmem:[%s281 + $0x100] sm:$0xff]
        %v379 = vld [vmem:[%s281 + $0x108] sm:$0xff]
        %v380 = vld [vmem:[%s281 + $0x110] sm:$0xff]
        %v381 = vld [vmem:[%s281 + $0x118] sm:$0xff]
        %v382 = vld [vmem:[%s281 + $0x120] sm:$0xff]
        %v383 = vld [vmem:[%s281 + $0x128] sm:$0xff]
        %v384 = vld [vmem:[%s281 + $0x130] sm:$0xff]
        %v385 = vld [vmem:[%s281 + $0x138] sm:$0xff]
        %v386 = vld [vmem:[%s281 + $0x140] sm:$0xff]
        %v387 = vld [vmem:[%s281 + $0x148] sm:$0xff]
        %v388 = vld [vmem:[%s281 + $0x150] sm:$0xff]
        %v389 = vld [vmem:[%s281 + $0x158] sm:$0xff]
        %v390 = vld [vmem:[%s281 + $0x160] sm:$0xff]
        %v391 = vld [vmem:[%s281 + $0x168] sm:$0xff]
        %v392 = vld [vmem:[%s281 + $0x170] sm:$0xff]
        %v393 = vld [vmem:[%s281 + $0x178] sm:$0xff]
        %v394 = vld [vmem:[%s281 + $0x180] sm:$0xff]
        %v395 = vld [vmem:[%s281 + $0x188] sm:$0xff]
        %v396 = vld [vmem:[%s281 + $0x190] sm:$0xff]
        %v397 = vld [vmem:[%s281 + $0x198] sm:$0xff]
        %v398 = vld [vmem:[%s281 + $0x1a0] sm:$0xff]
        %v399 = vld [vmem:[%s281 + $0x1a8] sm:$0xff]
        %v400 = vld [vmem:[%s281 + $0x1b0] sm:$0xff]
        %v401 = vld [vmem:[%s281 + $0x1b8] sm:$0xff]
        %v402 = vld [vmem:[%s281 + $0x1c0] sm:$0xff]
        %v403 = vld [vmem:[%s281 + $0x1c8] sm:$0xff]
        %v404 = vld [vmem:[%s281 + $0x1d0] sm:$0xff]
        %v405 = vld [vmem:[%s281 + $0x1d8] sm:$0xff]
        %v406 = vld [vmem:[%s281 + $0x1e0] sm:$0xff]
        %v407 = vld [vmem:[%s281 + $0x1e8] sm:$0xff]
        %v408 = vld [vmem:[%s281 + $0x1f0] sm:$0xff]
        %v409 = vld [vmem:[%s281 + $0x1f8] sm:$0xff]
        %v410 = vld [vmem:[%s281 + $0x200] sm:$0xff]
        %v411 = vld [vmem:[%s281 + $0x208] sm:$0xff]
        %v412 = vld [vmem:[%s281 + $0x210] sm:$0xff]
        %v413 = vld [vmem:[%s281 + $0x218] sm:$0xff]
        %v414 = vld [vmem:[%s281 + $0x220] sm:$0xff]
        %v415 = vld [vmem:[%s281 + $0x228] sm:$0xff]
        %v416 = vld [vmem:[%s281 + $0x230] sm:$0xff]
        %v417 = vld [vmem:[%s281 + $0x238] sm:$0xff]
        %v418 = vld [vmem:[%s281 + $0x240] sm:$0xff]
        %v419 = vld [vmem:[%s281 + $0x248] sm:$0xff]
        %v420 = vld [vmem:[%s281 + $0x250] sm:$0xff]
        %v421 = vld [vmem:[%s281 + $0x258] sm:$0xff]
        %v422 = vld [vmem:[%s281 + $0x260] sm:$0xff]
        %v423 = vld [vmem:[%s281 + $0x268] sm:$0xff]
        %v424 = vld [vmem:[%s281 + $0x270] sm:$0xff]
        %v425 = vld [vmem:[%s281 + $0x278] sm:$0xff]
        %v426 = vld [vmem:[%s281 + $0x280] sm:$0xff]
        %v427 = vld [vmem:[%s281 + $0x288] sm:$0xff]
        %v428 = vld [vmem:[%s281 + $0x290] sm:$0xff]
        %v429 = vld [vmem:[%s281 + $0x298] sm:$0xff]
        %v430 = vld [vmem:[%s281 + $0x2a0] sm:$0xff]
        %v431 = vld [vmem:[%s281 + $0x2a8] sm:$0xff]
        %v432 = vld [vmem:[%s281 + $0x2b0] sm:$0xff]
        %v433 = vld [vmem:[%s281 + $0x2b8] sm:$0xff]
        %v434 = vld [vmem:[%s281 + $0x2c0] sm:$0xff]
        %v435 = vld [vmem:[%s281 + $0x2c8] sm:$0xff]
        %v436 = vld [vmem:[%s281 + $0x2d0] sm:$0xff]
        %v437 = vld [vmem:[%s281 + $0x2d8] sm:$0xff]
        %v438 = vld [vmem:[%s281 + $0x2e0] sm:$0xff]
        %v439 = vld [vmem:[%s281 + $0x2e8] sm:$0xff]
        %v440 = vld [vmem:[%s281 + $0x2f0] sm:$0xff]
        %v441 = vld [vmem:[%s281 + $0x2f8] sm:$0xff]
        %v442 = vld [vmem:[%s281 + $0x300] sm:$0xff]
        %v443 = vld [vmem:[%s281 + $0x308] sm:$0xff]
        %v444 = vld [vmem:[%s281 + $0x310] sm:$0xff]
        %v445 = vld [vmem:[%s281 + $0x318] sm:$0xff]
        %v446 = vld [vmem:[%s281 + $0x320] sm:$0xff]
        %v447 = vld [vmem:[%s281 + $0x328] sm:$0xff]
        %v448 = vld [vmem:[%s281 + $0x330] sm:$0xff]
        %v449 = vld [vmem:[%s281 + $0x338] sm:$0xff]
        %v450 = vld [vmem:[%s281 + $0x340] sm:$0xff]
        %v451 = vld [vmem:[%s281 + $0x348] sm:$0xff]
        %v452 = vld [vmem:[%s281 + $0x350] sm:$0xff]
        %v453 = vld [vmem:[%s281 + $0x358] sm:$0xff]
        %v454 = vld [vmem:[%s281 + $0x360] sm:$0xff]
        %v455 = vld [vmem:[%s281 + $0x368] sm:$0xff]
        %v456 = vld [vmem:[%s281 + $0x370] sm:$0xff]
        %v457 = vld [vmem:[%s281 + $0x378] sm:$0xff]
        %v458 = vld [vmem:[%s281 + $0x380] sm:$0xff]
        %v459 = vld [vmem:[%s281 + $0x388] sm:$0xff]
        %v460 = vld [vmem:[%s281 + $0x390] sm:$0xff]
        %v461 = vld [vmem:[%s281 + $0x398] sm:$0xff]
        %v462 = vld [vmem:[%s281 + $0x3a0] sm:$0xff]
        %v463 = vld [vmem:[%s281 + $0x3a8] sm:$0xff]
        %v464 = vld [vmem:[%s281 + $0x3b0] sm:$0xff]
        %v465 = vld [vmem:[%s281 + $0x3b8] sm:$0xff]
        %v466 = vld [vmem:[%s281 + $0x3c0] sm:$0xff]
        %v467 = vld [vmem:[%s281 + $0x3c8] sm:$0xff]
        %v468 = vld [vmem:[%s281 + $0x3d0] sm:$0xff]
        %v469 = vld [vmem:[%s281 + $0x3d8] sm:$0xff]
        %v470 = vld [vmem:[%s281 + $0x3e0] sm:$0xff]
        %v471 = vld [vmem:[%s281 + $0x3e8] sm:$0xff]
        %v472 = vld [vmem:[%s281 + $0x3f0] sm:$0xff]
        %v473 = vld [vmem:[%s281 + $0x3f8] sm:$0xff]
        %v474 = vadd.f32 %v346, %v347
        %475 = vadd.xlane.f32.xlu0 %v474
        %v476 = vpop.xlane.xlu0 %475
        %v477 = vadd.f32 %v348, %v349
        %478 = vadd.xlane.f32.xlu0 %v477
        %v479 = vpop.xlane.xlu0 %478
        %v480 = vadd.f32 %v350, %v351
        %481 = vadd.xlane.f32.xlu0 %v480
        %v482 = vpop.xlane.xlu0 %481
        %v483 = vadd.f32 %v352, %v353
        %484 = vadd.xlane.f32.xlu0 %v483
        %v485 = vpop.xlane.xlu0 %484
        %v486 = vadd.f32 %v354, %v355
        %487 = vadd.xlane.f32.xlu0 %v486
        %v488 = vpop.xlane.xlu0 %487
        %v489 = vadd.f32 %v356, %v357
        %490 = vadd.xlane.f32.xlu0 %v489
        %v491 = vpop.xlane.xlu0 %490
        %v492 = vadd.f32 %v358, %v359
        %493 = vadd.xlane.f32.xlu0 %v492
        %v494 = vpop.xlane.xlu0 %493
        %v495 = vadd.f32 %v360, %v361
        %496 = vadd.xlane.f32.xlu0 %v495
        %v497 = vpop.xlane.xlu0 %496
        %v498 = vadd.f32 %v362, %v363
        %499 = vadd.xlane.f32.xlu0 %v498
        %v500 = vpop.xlane.xlu0 %499
        %v501 = vadd.f32 %v364, %v365
        %502 = vadd.xlane.f32.xlu0 %v501
        %v503 = vpop.xlane.xlu0 %502
        %v504 = vadd.f32 %v366, %v367
        %505 = vadd.xlane.f32.xlu0 %v504
        %v506 = vpop.xlane.xlu0 %505
        %v507 = vadd.f32 %v368, %v369
        %508 = vadd.xlane.f32.xlu0 %v507
        %v509 = vpop.xlane.xlu0 %508
        %v510 = vadd.f32 %v370, %v371
        %511 = vadd.xlane.f32.xlu0 %v510
        %v512 = vpop.xlane.xlu0 %511
        %v513 = vadd.f32 %v372, %v373
        %514 = vadd.xlane.f32.xlu0 %v513
        %v515 = vpop.xlane.xlu0 %514
        %v516 = vadd.f32 %v374, %v375
        %517 = vadd.xlane.f32.xlu0 %v516
        %v518 = vpop.xlane.xlu0 %517
        %v519 = vadd.f32 %v376, %v377
        %520 = vadd.xlane.f32.xlu0 %v519
        %v521 = vpop.xlane.xlu0 %520
        %v522 = vadd.f32 %v378, %v379
        %523 = vadd.xlane.f32.xlu0 %v522
        %v524 = vpop.xlane.xlu0 %523
        %v525 = vadd.f32 %v380, %v381
        %526 = vadd.xlane.f32.xlu0 %v525
        %v527 = vpop.xlane.xlu0 %526
        %v528 = vadd.f32 %v382, %v383
        %529 = vadd.xlane.f32.xlu0 %v528
        %v530 = vpop.xlane.xlu0 %529
        %v531 = vadd.f32 %v384, %v385
        %532 = vadd.xlane.f32.xlu0 %v531
        %v533 = vpop.xlane.xlu0 %532
        %v534 = vadd.f32 %v386, %v387
        %535 = vadd.xlane.f32.xlu0 %v534
        %v536 = vpop.xlane.xlu0 %535
        %v537 = vadd.f32 %v388, %v389
        %538 = vadd.xlane.f32.xlu0 %v537
        %v539 = vpop.xlane.xlu0 %538
        %v540 = vadd.f32 %v390, %v391
        %541 = vadd.xlane.f32.xlu0 %v540
        %v542 = vpop.xlane.xlu0 %541
        %v543 = vadd.f32 %v392, %v393
        %544 = vadd.xlane.f32.xlu0 %v543
        %v545 = vpop.xlane.xlu0 %544
        %v546 = vadd.f32 %v394, %v395
        %547 = vadd.xlane.f32.xlu0 %v546
        %v548 = vpop.xlane.xlu0 %547
        %v549 = vadd.f32 %v396, %v397
        %550 = vadd.xlane.f32.xlu0 %v549
        %v551 = vpop.xlane.xlu0 %550
        %v552 = vadd.f32 %v398, %v399
        %553 = vadd.xlane.f32.xlu0 %v552
        %v554 = vpop.xlane.xlu0 %553
        %v555 = vadd.f32 %v400, %v401
        %556 = vadd.xlane.f32.xlu0 %v555
        %v557 = vpop.xlane.xlu0 %556
        %v558 = vadd.f32 %v402, %v403
        %559 = vadd.xlane.f32.xlu0 %v558
        %v560 = vpop.xlane.xlu0 %559
        %v561 = vadd.f32 %v404, %v405
        %562 = vadd.xlane.f32.xlu0 %v561
        %v563 = vpop.xlane.xlu0 %562
        %v564 = vadd.f32 %v406, %v407
        %565 = vadd.xlane.f32.xlu0 %v564
        %v566 = vpop.xlane.xlu0 %565
        %v567 = vadd.f32 %v408, %v409
        %568 = vadd.xlane.f32.xlu0 %v567
        %v569 = vpop.xlane.xlu0 %568
        %v570 = vadd.f32 %v410, %v411
        %571 = vadd.xlane.f32.xlu0 %v570
        %v572 = vpop.xlane.xlu0 %571
        %v573 = vadd.f32 %v412, %v413
        %574 = vadd.xlane.f32.xlu0 %v573
        %v575 = vpop.xlane.xlu0 %574
        %v576 = vadd.f32 %v414, %v415
        %577 = vadd.xlane.f32.xlu0 %v576
        %v578 = vpop.xlane.xlu0 %577
        %v579 = vadd.f32 %v416, %v417
        %580 = vadd.xlane.f32.xlu0 %v579
        %v581 = vpop.xlane.xlu0 %580
        %v582 = vadd.f32 %v418, %v419
        %583 = vadd.xlane.f32.xlu0 %v582
        %v584 = vpop.xlane.xlu0 %583
        %v585 = vadd.f32 %v420, %v421
        %586 = vadd.xlane.f32.xlu0 %v585
        %v587 = vpop.xlane.xlu0 %586
        %v588 = vadd.f32 %v422, %v423
        %589 = vadd.xlane.f32.xlu0 %v588
        %v590 = vpop.xlane.xlu0 %589
        %v591 = vadd.f32 %v424, %v425
        %592 = vadd.xlane.f32.xlu0 %v591
        %v593 = vpop.xlane.xlu0 %592
        %v594 = vadd.f32 %v426, %v427
        %595 = vadd.xlane.f32.xlu0 %v594
        %v596 = vpop.xlane.xlu0 %595
        %v597 = vadd.f32 %v428, %v429
        %598 = vadd.xlane.f32.xlu0 %v597
        %v599 = vpop.xlane.xlu0 %598
        %v600 = vadd.f32 %v430, %v431
        %601 = vadd.xlane.f32.xlu0 %v600
        %v602 = vpop.xlane.xlu0 %601
        %v603 = vadd.f32 %v432, %v433
        %604 = vadd.xlane.f32.xlu0 %v603
        %v605 = vpop.xlane.xlu0 %604
        %v606 = vadd.f32 %v434, %v435
        %607 = vadd.xlane.f32.xlu0 %v606
        %v608 = vpop.xlane.xlu0 %607
        %v609 = vadd.f32 %v436, %v437
        %610 = vadd.xlane.f32.xlu0 %v609
        %v611 = vpop.xlane.xlu0 %610
        %v612 = vadd.f32 %v438, %v439
        %613 = vadd.xlane.f32.xlu0 %v612
        %v614 = vpop.xlane.xlu0 %613
        %v615 = vadd.f32 %v440, %v441
        %616 = vadd.xlane.f32.xlu0 %v615
        %v617 = vpop.xlane.xlu0 %616
        %v618 = vadd.f32 %v442, %v443
        %619 = vadd.xlane.f32.xlu0 %v618
        %v620 = vpop.xlane.xlu0 %619
        %v621 = vadd.f32 %v444, %v445
        %622 = vadd.xlane.f32.xlu0 %v621
        %v623 = vpop.xlane.xlu0 %622
        %v624 = vadd.f32 %v446, %v447
        %625 = vadd.xlane.f32.xlu0 %v624
        %v626 = vpop.xlane.xlu0 %625
        %v627 = vadd.f32 %v448, %v449
        %628 = vadd.xlane.f32.xlu0 %v627
        %v629 = vpop.xlane.xlu0 %628
        %v630 = vadd.f32 %v450, %v451
        %631 = vadd.xlane.f32.xlu0 %v630
        %v632 = vpop.xlane.xlu0 %631
        %v633 = vadd.f32 %v452, %v453
        %634 = vadd.xlane.f32.xlu0 %v633
        %v635 = vpop.xlane.xlu0 %634
        %v636 = vadd.f32 %v454, %v455
        %637 = vadd.xlane.f32.xlu0 %v636
        %v638 = vpop.xlane.xlu0 %637
        %v639 = vadd.f32 %v456, %v457
        %640 = vadd.xlane.f32.xlu0 %v639
        %v641 = vpop.xlane.xlu0 %640
        %v642 = vadd.f32 %v458, %v459
        %643 = vadd.xlane.f32.xlu0 %v642
        %v644 = vpop.xlane.xlu0 %643
        %v645 = vadd.f32 %v460, %v461
        %646 = vadd.xlane.f32.xlu0 %v645
        %v647 = vpop.xlane.xlu0 %646
        %v648 = vadd.f32 %v462, %v463
        %649 = vadd.xlane.f32.xlu0 %v648
        %v650 = vpop.xlane.xlu0 %649
        %v651 = vadd.f32 %v464, %v465
        %652 = vadd.xlane.f32.xlu0 %v651
        %v653 = vpop.xlane.xlu0 %652
        %v654 = vadd.f32 %v466, %v467
        %655 = vadd.xlane.f32.xlu0 %v654
        %v656 = vpop.xlane.xlu0 %655
        %v657 = vadd.f32 %v468, %v469
        %658 = vadd.xlane.f32.xlu0 %v657
        %v659 = vpop.xlane.xlu0 %658
        %v660 = vadd.f32 %v470, %v471
        %661 = vadd.xlane.f32.xlu0 %v660
        %v662 = vpop.xlane.xlu0 %661
        %v663 = vadd.f32 %v472, %v473
        %664 = vadd.xlane.f32.xlu0 %v663
        %v665 = vpop.xlane.xlu0 %664
        %v730 = vlaneseq
        %v731 = vand.u32 %v730, 127
        %v732 = vperm.slane %v476, %v731
        %v733 = vadd.s32 %v731, 4294967288
        %v734 = vperm.slane %v479, %v733
        %vm735 = vcmask 130112
        %v736 = vsel %vm735, %v734, %v732
        %v737 = vadd.s32 %v731, 4294967280
        %v738 = vperm.slane %v482, %v737
        %vm739 = vcmask 195712
        %v740 = vsel %vm739, %v738, %v736
        %v741 = vadd.s32 %v731, 4294967272
        %v742 = vperm.slane %v485, %v741
        %vm743 = vcmask 261312
        %v744 = vsel %vm743, %v742, %v740
        %v745 = vadd.s32 %v731, 4294967264
        %v746 = vperm.slane %v488, %v745
        %vm747 = vcmask 326912
        %v748 = vsel %vm747, %v746, %v744
        %v749 = vadd.s32 %v731, 4294967256
        %v750 = vperm.slane %v491, %v749
        %vm751 = vcmask 392512
        %v752 = vsel %vm751, %v750, %v748
        %v753 = vadd.s32 %v731, 4294967248
        %v754 = vperm.slane %v494, %v753
        %vm755 = vcmask 458112
        %v756 = vsel %vm755, %v754, %v752
        %v757 = vadd.s32 %v731, 4294967240
        %v758 = vperm.slane %v497, %v757
        %vm759 = vcmask 523712
        %v760 = vsel %vm759, %v758, %v756
        %v761 = vadd.s32 %v731, 4294967232
        %v762 = vperm.slane %v500, %v761
        %vm763 = vcmask 589312
        %v764 = vsel %vm763, %v762, %v760
        %v765 = vadd.s32 %v731, 4294967224
        %v766 = vperm.slane %v503, %v765
        %vm767 = vcmask 654912
        %v768 = vsel %vm767, %v766, %v764
        %v769 = vadd.s32 %v731, 4294967216
        %v770 = vperm.slane %v506, %v769
        %vm771 = vcmask 720512
        %v772 = vsel %vm771, %v770, %v768
        %v773 = vadd.s32 %v731, 4294967208
        %v774 = vperm.slane %v509, %v773
        %vm775 = vcmask 786112
        %v776 = vsel %vm775, %v774, %v772
        %v777 = vadd.s32 %v731, 4294967200
        %v778 = vperm.slane %v512, %v777
        %vm779 = vcmask 851712
        %v780 = vsel %vm779, %v778, %v776
        %v781 = vadd.s32 %v731, 4294967192
        %v782 = vperm.slane %v515, %v781
        %vm783 = vcmask 917312
        %v784 = vsel %vm783, %v782, %v780
        %v785 = vadd.s32 %v731, 4294967184
        %v786 = vperm.slane %v518, %v785
        %vm787 = vcmask 982912
        %v788 = vsel %vm787, %v786, %v784
        %v789 = vadd.s32 %v731, 4294967176
        %v790 = vperm.slane %v521, %v789
        %vm791 = vcmask 1048512
        %v792 = vsel %vm791, %v790, %v788
        %v793 = vperm.slane %v524, %v731
        %v794 = vperm.slane %v527, %v733
        %v795 = vsel %vm735, %v794, %v793
        %v796 = vperm.slane %v530, %v737
        %v797 = vsel %vm739, %v796, %v795
        %v798 = vperm.slane %v533, %v741
        %v799 = vsel %vm743, %v798, %v797
        %v800 = vperm.slane %v536, %v745
        %v801 = vsel %vm747, %v800, %v799
        %v802 = vperm.slane %v539, %v749
        %v803 = vsel %vm751, %v802, %v801
        %v804 = vperm.slane %v542, %v753
        %v805 = vsel %vm755, %v804, %v803
        %v806 = vperm.slane %v545, %v757
        %v807 = vsel %vm759, %v806, %v805
        %v808 = vperm.slane %v548, %v761
        %v809 = vsel %vm763, %v808, %v807
        %v810 = vperm.slane %v551, %v765
        %v811 = vsel %vm767, %v810, %v809
        %v812 = vperm.slane %v554, %v769
        %v813 = vsel %vm771, %v812, %v811
        %v814 = vperm.slane %v557, %v773
        %v815 = vsel %vm775, %v814, %v813
        %v816 = vperm.slane %v560, %v777
        %v817 = vsel %vm779, %v816, %v815
        %v818 = vperm.slane %v563, %v781
        %v819 = vsel %vm783, %v818, %v817
        %v820 = vperm.slane %v566, %v785
        %v821 = vsel %vm787, %v820, %v819
        %v822 = vperm.slane %v569, %v789
        %v823 = vsel %vm791, %v822, %v821
        %v824 = vperm.slane %v572, %v731
        %v825 = vperm.slane %v575, %v733
        %v826 = vsel %vm735, %v825, %v824
        %v827 = vperm.slane %v578, %v737
        %v828 = vsel %vm739, %v827, %v826
        %v829 = vperm.slane %v581, %v741
        %v830 = vsel %vm743, %v829, %v828
        %v831 = vperm.slane %v584, %v745
        %v832 = vsel %vm747, %v831, %v830
        %v833 = vperm.slane %v587, %v749
        %v834 = vsel %vm751, %v833, %v832
        %v835 = vperm.slane %v590, %v753
        %v836 = vsel %vm755, %v835, %v834
        %v837 = vperm.slane %v593, %v757
        %v838 = vsel %vm759, %v837, %v836
        %v839 = vperm.slane %v596, %v761
        %v840 = vsel %vm763, %v839, %v838
        %v841 = vperm.slane %v599, %v765
        %v842 = vsel %vm767, %v841, %v840
        %v843 = vperm.slane %v602, %v769
        %v844 = vsel %vm771, %v843, %v842
        %v845 = vperm.slane %v605, %v773
        %v846 = vsel %vm775, %v845, %v844
        %v847 = vperm.slane %v608, %v777
        %v848 = vsel %vm779, %v847, %v846
        %v849 = vperm.slane %v611, %v781
        %v850 = vsel %vm783, %v849, %v848
        %v851 = vperm.slane %v614, %v785
        %v852 = vsel %vm787, %v851, %v850
        %v853 = vperm.slane %v617, %v789
        %v854 = vsel %vm791, %v853, %v852
        %v855 = vperm.slane %v620, %v731
        %v856 = vperm.slane %v623, %v733
        %v857 = vsel %vm735, %v856, %v855
        %v858 = vperm.slane %v626, %v737
        %v859 = vsel %vm739, %v858, %v857
        %v860 = vperm.slane %v629, %v741
        %v861 = vsel %vm743, %v860, %v859
        %v862 = vperm.slane %v632, %v745
        %v863 = vsel %vm747, %v862, %v861
        %v864 = vperm.slane %v635, %v749
        %v865 = vsel %vm751, %v864, %v863
        %v866 = vperm.slane %v638, %v753
        %v867 = vsel %vm755, %v866, %v865
        %v868 = vperm.slane %v641, %v757
        %v869 = vsel %vm759, %v868, %v867
        %v870 = vperm.slane %v644, %v761
        %v871 = vsel %vm763, %v870, %v869
        %v872 = vperm.slane %v647, %v765
        %v873 = vsel %vm767, %v872, %v871
        %v874 = vperm.slane %v650, %v769
        %v875 = vsel %vm771, %v874, %v873
        %v876 = vperm.slane %v653, %v773
        %v877 = vsel %vm775, %v876, %v875
        %v878 = vperm.slane %v656, %v777
        %v879 = vsel %vm779, %v878, %v877
        %v880 = vperm.slane %v659, %v781
        %v881 = vsel %vm783, %v880, %v879
        %v882 = vperm.slane %v662, %v785
        %v883 = vsel %vm787, %v882, %v881
        %v884 = vperm.slane %v665, %v789
        %v885 = vsel %vm791, %v884, %v883
        %vm886 = vcmask 1041409
        %v887 = vsel %vm886, %v823, %v792
        %vm888 = vcmask 1042434
        %v889 = vsel %vm888, %v854, %v887
        %vm890 = vcmask 1043459
        %v891 = vsel %vm890, %v885, %v889
        %v893 = vadd.f32 %v345, %v891
        %894 = vst [vmem:[%s330] sm:$0xf] %v893
        // Predicated region
        $region49: #{tpu_custom_call.1} parent=31 // pred_check
          %p895 = pneg %p340
        $region50: #{tpu_custom_call.1} parent=31 // pred_check_branch
          %897 = sbr.rel (%p895) target = $region52
        $region51: #{tpu_custom_call.1} parent=31 // pred_region
          %v898 = vld [vmem:[%s330] sm:$0xf]
          %v899 = vmul.f32 %v898, 0.00390625
          %900 = vst [vmem:[%s330] sm:$0xf] %v899
          %vm901 = vcmask 1043456
          %v902 = vsel %vm901, %v899, 0.0
          %v903 = vrot.slane %v902, 4
          %v904 = vadd.f32 %v902, %v903
          %v905 = vrot.slane %v904, 2
          %v906 = vadd.f32 %v904, %v905
          %v907 = vrot.slane %v906, 1
          %v908 = vadd.f32 %v906, %v907
          %v909 = vrcp.pop 4.0
          %v910 = vmul.f32 4.0, %v909
          %v911 = vsub.f32 1.0, %v910
          %v912 = vmul.f32 %v909, %v911
          %v913 = vadd.f32 %v909, %v912
          %vm914 = vweird.f32 %v909
          %v915 = vsel %vm914, %v909, %v913
          %v916 = vmul.f32 %v908, %v915
          %v917 = vsub.f32 %v899, %v916
          %v918 = vmul.f32 %v917, %v917
          %v919 = vsel %vm901, %v918, 0.0
          %v920 = vrot.slane %v919, 4
          %v921 = vadd.f32 %v919, %v920
          %v922 = vrot.slane %v921, 2
          %v923 = vadd.f32 %v921, %v922
          %v924 = vrot.slane %v923, 1
          %v925 = vadd.f32 %v923, %v924
          %v926 = vmul.f32 %v925, %v915
          %v927 = vld [vmem:[%s290] sm:$0x1]
          %v928 = vadd.f32 %v926, 1e-05
          %v929 = vrsqrt.pop %v928
          %v930 = vmul.f32 %v929, %v928
          %v931 = vmul.f32 %v930, %v929
          %v932 = vmul.f32 0.5, %v931
          %v933 = vsub.f32 1.5, %v932
          %v934 = vmul.f32 %v929, %v933
          %vm935 = vweird.f32 %v928
          %vm936 = vweird.f32 %v929
          %vm937 = vmor %vm935, %vm936
          %v938 = vsel %vm937, %v929, %v934
          %v939 = vmul.f32 %v927, %v938
          %v941 = vperm.slane %v939, 0
          %v943 = vmul.f32 %v917, %v941
          %v944 = vld [vmem:[%s299] sm:$0x1]
          %v946 = vperm.slane %v944, 0
          %v948 = vadd.f32 %v943, %v946
          %949 = vst [vmem:[%s337] sm:$0xf] %v948
        $region52: #{tpu_custom_call.1} parent=31 // pred_fallthru
          _
        %s950 = sand.u32 %s128, 1
        %s951 = scalar_lea.sflag [#allocation4], %s950
        %s952 = sand.u32 %s128, 1
        %s953 = smul.addr %s952, 4
        %s954 = scalar_lea.vmem [#allocation8], %s953
        %s955 = sand.u32 %s154, 1
        %s956 = scalar_lea.sflag [#allocation10], %s955
        %s957 = sand.u32 %s154, 1
        %s958 = smul.addr %s957, 4
        %s959 = scalar_lea.vmem [#allocation9], %s958
        // Predicated region
        $region53: #{tpu_custom_call.1} parent=31 // pred_check
          %p960 = pneg %p138
        $region54: #{tpu_custom_call.1} parent=31 // pred_check_branch
          %962 = sbr.rel (%p960) target = $region56
        $region55: #{tpu_custom_call.1} parent=31 // pred_region
          %964 = vsyncadd %s951, 0
          %s965 = smul.addr %s32, 4
          %s966 = scalar_lea.hbm %s3, %s965
          %s968 = sshll.u32 %s954, 4
          %s969 = int_to_ptr.vmem [resolvable:$true] %s968
          %s970 = sshll.u32 %s966, 4
          %s971 = int_to_ptr.hbm [resolvable:$true] %s970
          %973 = dma.vmem_to_hbm [thread:$0]  %s969, 64, %s971, %s951
        $region56: #{tpu_custom_call.1} parent=31 // pred_fallthru
          _
        // Predicated region
        $region57: #{tpu_custom_call.1} parent=31 // pred_check
          %p974 = pneg %p164
        $region58: #{tpu_custom_call.1} parent=31 // pred_check_branch
          %976 = sbr.rel (%p974) target = $region60
        $region59: #{tpu_custom_call.1} parent=31 // pred_region
          %978 = vsyncadd %s956, 0
          %s979 = smul.addr %s32, 4
          %s980 = scalar_lea.hbm %s4, %s979
          %s982 = sshll.u32 %s959, 4
          %s983 = int_to_ptr.vmem [resolvable:$true] %s982
          %s984 = sshll.u32 %s980, 4
          %s985 = int_to_ptr.hbm [resolvable:$true] %s984
          %987 = dma.vmem_to_hbm [thread:$0]  %s983, 64, %s985, %s956
        $region60: #{tpu_custom_call.1} parent=31 // pred_fallthru
          _
      $region32: #{tpu_custom_call.1} parent=5 // pred_fallthru
        _
      %p988 = scmp.le.s32.totalorder 2, %s23
      // Predicated region
      $region61: #{tpu_custom_call.1} parent=5 // pred_check
        %p989 = pneg %p988
      $region62: #{tpu_custom_call.1} parent=5 // pred_check_branch
        %991 = sbr.rel (%p989) target = $region64
      $region63: #{tpu_custom_call.1} parent=5 // pred_region
        %s992 = ssub.s32 %s23, 2
        // Predicated region
        $region65: #{tpu_custom_call.1} parent=63 // pred_check
          %p993 = pneg %p144
        $region66: #{tpu_custom_call.1} parent=63 // pred_check_branch
          %995 = sbr.rel (%p993) target = $region68
        $region67: #{tpu_custom_call.1} parent=63 // pred_region
          %s996 = sand.u32 %s129, 1
          %s997 = scalar_lea.sflag [#allocation4], %s996
          %s998 = sand.u32 %s129, 1
          %s999 = smul.addr %s998, 4
          %s1000 = scalar_lea.vmem [#allocation8], %s999
          %1002 = dma.done %s997, 64
        $region68: #{tpu_custom_call.1} parent=63 // pred_fallthru
          _
        // Predicated region
        $region69: #{tpu_custom_call.1} parent=63 // pred_check
          %p1003 = pneg %p170
        $region70: #{tpu_custom_call.1} parent=63 // pred_check_branch
          %1005 = sbr.rel (%p1003) target = $region72
        $region71: #{tpu_custom_call.1} parent=63 // pred_region
          %s1006 = sand.u32 %s155, 1
          %s1007 = scalar_lea.sflag [#allocation10], %s1006
          %s1008 = sand.u32 %s155, 1
          %s1009 = smul.addr %s1008, 4
          %s1010 = scalar_lea.vmem [#allocation9], %s1009
          %1012 = dma.done %s1007, 64
        $region72: #{tpu_custom_call.1} parent=63 // pred_fallthru
          _
      $region64: #{tpu_custom_call.1} parent=5 // pred_fallthru
        _
    $region6: #{tpu_custom_call.1} parent=1 // loop_footer
      %s27 = sadd.s32 1, %s23
    $region7: #{tpu_custom_call.1} parent=1 // loop_footer_branch
      %22 = sbr.rel target = $region3
    $region8: #{tpu_custom_call.1} parent=1 // loop_exit
      _
    %1013 = vsyncpa [#allocation3], 1
    %s1014 = scalar_lea.sflag [#allocation3], 1
    %1015 = vsyncpa %s1014, 1
    %1016 = vsyncpa [#allocation6], 1
    %s1017 = scalar_lea.sflag [#allocation6], 1
    %1018 = vsyncpa %s1017, 1
    %1019 = vsyncpa [#allocation4], 1
    %s1020 = scalar_lea.sflag [#allocation4], 1
    %1021 = vsyncpa %s1020, 1
    %1022 = vsyncpa [#allocation10], 1
    %s1023 = scalar_lea.sflag [#allocation10], 1
    %1024 = vsyncpa %s1023, 1

</llo_original>
